<compile_context>
chip_gen: v7x
topology: tpu7x:2x2x1
jax: 0.10.0
libtpu: 0.0.40
codegen_flags: <defaults>
</compile_context>

<pallas_src>
import numpy as np
import jax
import jax.numpy as jnp
from jax.experimental import pallas as pl
from jax.experimental.pallas import tpu as pltpu


def _round_up(n, m):
    return ((n + m - 1) // m) * m


def _choose_k_tile(k_all, k_tile_max):
    """Full contraction extent if it fits, else a 128-multiple divisor of Kall."""
    if k_all <= k_tile_max:
        return k_all
    tk = (k_tile_max // 128) * 128
    while tk >= 128:
        if k_all % tk == 0:
            return tk
        tk -= 128
    return k_all  # fallback: single shot


# --------------------------------------------------------------------------
# Pallas kernel: K-tiled  patches @ W  ->  + (BN-folded) bias -> LeakyReLU
# --------------------------------------------------------------------------
def _gemm_bn_lrelu_kernel(p_ref, w_ref, b_ref, o_ref, acc_ref):
    # p: (TM, tk)  w: (tk, Cp)  b: (1, Cp)  o: (TM, Cp)  acc: (TM, Cp) f32
    k = pl.program_id(1)

    @pl.when(k == 0)
    def _():
        acc_ref[...] = jnp.zeros_like(acc_ref)

    acc_ref[...] += jnp.dot(p_ref[...], w_ref[...],
                            preferred_element_type=jnp.float32)

    @pl.when(k == pl.num_programs(1) - 1)
    def _():
        y = acc_ref[...] + b_ref[...]
        # LeakyReLU, default negative_slope = 0.01 (matches nn.LeakyReLU()).
        o_ref[...] = jnp.where(y >= 0.0, y, 0.01 * y).astype(o_ref.dtype)


# --------------------------------------------------------------------------
# One layer: Conv3d (VALID, stride s) + BatchNorm3d(eval) + LeakyReLU
# Input / output are channels-last (N, D, H, W, C).
# --------------------------------------------------------------------------
def conv_bn_lrelu_layer(x_ndhwc, w_oidhw, b, gamma, beta, mean, var,
                        kernel_size, stride, eps, *,
                        matmul_dtype=jnp.bfloat16,
                        row_tile=512, lane_tile=128, k_tile_max=2048):
    N, D, H, W, Cin = x_ndhwc.shape
    Cout = w_oidhw.shape[0]
    K, s = kernel_size, stride
    OD = (D - K) // s + 1
    OH = (H - K) // s + 1
    OW = (W - K) // s + 1
    M = N * OD * OH * OW
    Kall = Cin * K * K * K

    f32_path = np.dtype(matmul_dtype) == np.dtype(np.float32)

    # ---- patch extraction (one XLA op).  Feature ordering is channel-major:
    #      feature index = cin*K^3 + ((kd*K)+kh)*K + kw  ----
    x_cast = x_ndhwc if f32_path else x_ndhwc.astype(matmul_dtype)
    patches = jax.lax.conv_general_dilated_patches(
        x_cast, filter_shape=(K, K, K), window_strides=(s, s, s),
        padding="VALID", dimension_numbers=("NDHWC", "DHWIO", "NDHWC"),
        precision=jax.lax.Precision.HIGHEST if f32_path else None,
    )                                             # (N, OD, OH, OW, Cin*K^3)
    patches = patches.reshape(M, Kall)            # unpadded -> no K/M pad copies

    # ---- fold eval-mode BatchNorm + conv bias into GEMM weight / bias ----
    scale = gamma / jnp.sqrt(var + eps)                       # (Cout,)
    w_mat = w_oidhw.reshape(Cout, Kall).T                     # matches patch order
    w_eff = (w_mat * scale[None, :]).astype(matmul_dtype)     # (Kall, Cout)
    b_eff = (b - mean) * scale + beta                         # (Cout,) f32

    # ---- pad only the (small) Cout axis -> lane-dense output stores ----
    Cp = _round_up(Cout, lane_tile)
    w_p = jnp.zeros((Kall, Cp), matmul_dtype).at[:, :Cout].set(w_eff)
    b_p = jnp.zeros((1, Cp), jnp.float32).at[0, :Cout].set(b_eff)

    # ---- tiling ----
    assert row_tile % 8 == 0
    TM = row_tile if M > row_tile else _round_up(M, 8)
    tk = _choose_k_tile(Kall, k_tile_max)
    nk = Kall // tk

    out_p = pl.pallas_call(
        _gemm_bn_lrelu_kernel,
        out_shape=jax.ShapeDtypeStruct((M, Cp), jnp.float32),
        grid=(pl.cdiv(M, TM), nk),
        in_specs=[
            # patches row tile; last dim = tk (full extent or 128-multiple).
            pl.BlockSpec((TM, tk), lambda i, k: (i, k)),
            # weight / bias: constant over the row axis -> VMEM resident.
            pl.BlockSpec((tk, Cp), lambda i, k: (k, 0)),
            pl.BlockSpec((1, Cp), lambda i, k: (0, 0)),
        ],
        out_specs=pl.BlockSpec((TM, Cp), lambda i, k: (i, 0)),
        scratch_shapes=[pltpu.VMEM((TM, Cp), jnp.float32)],
        compiler_params=pltpu.CompilerParams(
            dimension_semantics=("parallel", "arbitrary"),   # megacore on rows
            vmem_limit_bytes=32 * 1024 * 1024,               # fits v5e..v7x
        ),
    )(patches, w_p, b_p)

    return out_p[:, :Cout].reshape(N, OD, OH, OW, Cout)


# --------------------------------------------------------------------------
# Full ConvNet forward (matches the PyTorch module's forward / flatten order)
# --------------------------------------------------------------------------
def convnet_forward(x_ncdhw, params, kernel_size, stride, eps=1e-3, *,
                    matmul_dtype=jnp.bfloat16, row_tile=512, lane_tile=128):
    x = jnp.transpose(x_ncdhw, (0, 2, 3, 4, 1))           # NCDHW -> NDHWC
    for (w, b, gamma, beta, mean, var) in params:
        x = conv_bn_lrelu_layer(x, w, b, gamma, beta, mean, var,
                                kernel_size, stride, eps,
                                matmul_dtype=matmul_dtype,
                                row_tile=row_tile, lane_tile=lane_tile)
    x = jnp.transpose(x, (0, 4, 1, 2, 3))                  # back to NCDHW
    return x.reshape(x.shape[0], -1)                       # x.view(-1, conv_output_size)


# --------------------------------------------------------------------------
# Pure-JAX reference (independent of the patches path) for validation
# --------------------------------------------------------------------------
def reference_forward(x_ncdhw, params, kernel_size, stride, eps=1e-3):
    x = x_ncdhw
    for (w, b, gamma, beta, mean, var) in params:
        y = jax.lax.conv_general_dilated(
            x, w, window_strides=(stride,) * 3, padding="VALID",
            dimension_numbers=("NCDHW", "OIDHW", "NCDHW"),
            precision=jax.lax.Precision.HIGHEST)
        y = y + b[None, :, None, None, None]
        scale = gamma / jnp.sqrt(var + eps)
        y = (y - mean[None, :, None, None, None]) * scale[None, :, None, None, None] \
            + beta[None, :, None, None, None]
        y = jnp.where(y >= 0.0, y, 0.01 * y)
        x = y
    return x.reshape(x.shape[0], -1)


# --------------------------------------------------------------------------
# Deterministic parameter init (mimics nn.Conv3d uniform(-1/sqrt(fan_in), .))
# --------------------------------------------------------------------------
def init_convnet_params(key, n_channels, kernel_size):
    params = []
    for cin, cout in zip(n_channels[:-1], n_channels[1:]):
        key, kw, kb, kg, kbe, km, kv = jax.random.split(key, 7)
        fan_in = cin * kernel_size ** 3
        bound = 1.0 / np.sqrt(fan_in)
        w = jax.random.uniform(kw, (cout, cin, kernel_size, kernel_size, kernel_size),
                               jnp.float32, -bound, bound)
        b = jax.random.uniform(kb, (cout,), jnp.float32, -bound, bound)
        # Non-trivial BN params / running stats so the BN folding is exercised.
        gamma = jax.random.uniform(kg, (cout,), jnp.float32, 0.5, 1.5)
        beta = jax.random.uniform(kbe, (cout,), jnp.float32, -0.5, 0.5)
        mean = jax.random.uniform(km, (cout,), jnp.float32, -0.1, 0.1)
        var = jax.random.uniform(kv, (cout,), jnp.float32, 0.5, 1.5)
        params.append((w, b, gamma, beta, mean, var))
    return params


if __name__ == "__main__":
    # Small shapes consistent with the module's forward (3-D conv input).
    batch = 2
    image_shape = (8, 8, 8)        # (D, H, W)
    n_channels = [2, 4, 8]         # two Conv3d layers: 2->4->8
    kernel_size = 3
    stride = 2
    eps = 1e-3                     # BatchNorm3d(eps=0.001)

    key = jax.random.PRNGKey(0)
    kx, kp = jax.random.split(key)
    x = jax.random.normal(kx, (batch, n_channels[0], *image_shape), dtype=jnp.float32)
    params = init_convnet_params(kp, n_channels, kernel_size)

    # f32 matmul path: validates indexing / BN-fold / fusion tightly.
    out_f32 = convnet_forward(x, params, kernel_size, stride, eps,
                              matmul_dtype=jnp.float32)
    out_f32 = jax.block_until_ready(out_f32)

    # bf16 matmul path: production mode for v6e/v7x MXU (f32 accumulate).
    out_bf16 = convnet_forward(x, params, kernel_size, stride, eps,
                               matmul_dtype=jnp.bfloat16)
    out_bf16 = jax.block_until_ready(out_bf16)

    # conv_output_size from the module's conv_output_shape formula.
    shape = np.array(image_shape, dtype=np.float64)
    for _ in range(len(n_channels) - 1):
        shape = np.floor((shape - (kernel_size - 1) - 1) / stride + 1)
    conv_output_size = int(n_channels[-1] * np.prod(shape).astype(int))
    assert out_f32.shape == (batch, conv_output_size), (out_f32.shape, conv_output_size)
    assert out_bf16.shape == (batch, conv_output_size)

    ref = reference_forward(x, params, kernel_size, stride, eps)
    np.testing.assert_allclose(np.asarray(out_f32), np.asarray(ref),
                               rtol=1e-4, atol=1e-4)
    # bf16 inputs -> looser tolerance (f32 MXU accumulation, bf16 operands).
    np.testing.assert_allclose(np.asarray(out_bf16), np.asarray(ref),
                               rtol=5e-2, atol=5e-2)

    print("KERNEL_OK")
</pallas_src>

<mosaic_0001>
module attributes {stable_mosaic.version = 11 : i64} {
  func.func @_gemm_bn_lrelu_kernel(%arg0: i32, %arg1: i32, %arg2: memref<56x54xf32, #tpu.memory_space<vmem>>, %arg3: memref<54x128xf32, #tpu.memory_space<vmem>>, %arg4: memref<1x128xf32, #tpu.memory_space<vmem>>, %arg5: memref<56x128xf32, #tpu.memory_space<vmem>>, %arg6: memref<56x128xf32, #tpu.memory_space<vmem>>) attributes {dimension_semantics = [#tpu.dimension_semantics<parallel>, #tpu.dimension_semantics<arbitrary>], iteration_bounds = array<i64: 1, 1>, scalar_prefetch = 0 : i64, scratch_operands = 1 : i64, tpu.core_type = #tpu.core_type<tc>, window_params = [{transform_indices = @transform_0, window_bounds = array<i64: 56, 54>}, {transform_indices = @transform_1, window_bounds = array<i64: 54, 128>}, {pipeline_mode = #tpu.pipeline_mode<synchronous>, transform_indices = @transform_2, window_bounds = array<i64: 1, 128>}, {transform_indices = @transform_3, window_bounds = array<i64: 56, 128>}]} {
    %c0_i32 = arith.constant 0 : i32
    %0 = arith.cmpi eq, %arg1, %c0_i32 : i32
    %1 = arith.extui %0 : i1 to i32
    %c0_i32_0 = arith.constant 0 : i32
    %2 = arith.cmpi ne, %1, %c0_i32_0 : i32
    scf.if %2 {
      %cst_10 = arith.constant 0.000000e+00 : f32
      %12 = vector.broadcast %cst_10 : f32 to vector<56x128xf32>
      %c0_11 = arith.constant 0 : index
      %c0_12 = arith.constant 0 : index
      %13 = vector.load %arg6[%c0_11, %c0_12] : memref<56x128xf32, #tpu.memory_space<vmem>>, vector<56x128xf32>
      tpu.vector_store %arg6[%c0_11, %c0_12], %12 {strides = array<i32>} : memref<56x128xf32, #tpu.memory_space<vmem>>, vector<56x128xf32>,
    } else {
    }
    %c0 = arith.constant 0 : index
    %c0_1 = arith.constant 0 : index
    %3 = vector.load %arg6[%c0, %c0_1] : memref<56x128xf32, #tpu.memory_space<vmem>>, vector<56x128xf32>
    %c0_2 = arith.constant 0 : index
    %c0_3 = arith.constant 0 : index
    %4 = vector.load %arg2[%c0_2, %c0_3] : memref<56x54xf32, #tpu.memory_space<vmem>>, vector<56x54xf32>
    %c0_4 = arith.constant 0 : index
    %c0_5 = arith.constant 0 : index
    %5 = vector.load %arg3[%c0_4, %c0_5] : memref<54x128xf32, #tpu.memory_space<vmem>>, vector<54x128xf32>
    %cst = arith.constant dense<0.000000e+00> : vector<56x128xf32>
    %6 = tpu.matmul %4, %5, %cst {dimension_numbers = #tpu.dot_dimension_numbers<[1], [0], [0], [1], [0, 0, 1, 1], [], []>} : vector<56x54xf32>, vector<54x128xf32>, vector<56x128xf32> -> vector<56x128xf32>
    %7 = arith.addf %3, %6 : vector<56x128xf32>
    %c0_6 = arith.constant 0 : index
    %c0_7 = arith.constant 0 : index
    %8 = vector.load %arg6[%c0_6, %c0_7] : memref<56x128xf32, #tpu.memory_space<vmem>>, vector<56x128xf32>
    tpu.vector_store %arg6[%c0_6, %c0_7], %7 {strides = array<i32>} : memref<56x128xf32, #tpu.memory_space<vmem>>, vector<56x128xf32>,
    %c0_i32_8 = arith.constant 0 : i32
    %9 = arith.cmpi eq, %arg1, %c0_i32_8 : i32
    %10 = arith.extui %9 : i1 to i32
    %c0_i32_9 = arith.constant 0 : i32
    %11 = arith.cmpi ne, %10, %c0_i32_9 : i32
    scf.if %11 {
      %c0_10 = arith.constant 0 : index
      %c0_11 = arith.constant 0 : index
      %12 = vector.load %arg6[%c0_10, %c0_11] : memref<56x128xf32, #tpu.memory_space<vmem>>, vector<56x128xf32>
      %c0_12 = arith.constant 0 : index
      %c0_13 = arith.constant 0 : index
      %13 = vector.load %arg4[%c0_12, %c0_13] : memref<1x128xf32, #tpu.memory_space<vmem>>, vector<1x128xf32>
      %14 = vector.broadcast %13 : vector<1x128xf32> to vector<56x128xf32>
      %15 = arith.addf %12, %14 : vector<56x128xf32>
      %cst_14 = arith.constant 0.000000e+00 : f32
      %16 = vector.broadcast %cst_14 : f32 to vector<56x128xf32>
      %17 = arith.cmpf oge, %15, %16 : vector<56x128xf32>
      %cst_15 = arith.constant 0.00999999977 : f32
      %18 = vector.broadcast %cst_15 : f32 to vector<56x128xf32>
      %19 = arith.mulf %18, %15 : vector<56x128xf32>
      %20 = arith.select %17, %15, %19 : vector<56x128xi1>, vector<56x128xf32>
      %c0_16 = arith.constant 0 : index
      %c0_17 = arith.constant 0 : index
      %21 = vector.load %arg5[%c0_16, %c0_17] : memref<56x128xf32, #tpu.memory_space<vmem>>, vector<56x128xf32>
      tpu.vector_store %arg5[%c0_16, %c0_17], %20 {strides = array<i32>} : memref<56x128xf32, #tpu.memory_space<vmem>>, vector<56x128xf32>,
    } else {
    }
    return
  }
  func.func @transform_0(%arg0: i32, %arg1: i32) -> (i32, i32) {
    %c0_i32 = arith.constant 0 : i32
    return %arg0, %arg1 : i32, i32
  }
  func.func @transform_1(%arg0: i32, %arg1: i32) -> (i32, i32) {
    %c0_i32 = arith.constant 0 : i32
    %c0_i32_0 = arith.constant 0 : i32
    return %arg1, %c0_i32 : i32, i32
  }
  func.func @transform_2(%arg0: i32, %arg1: i32) -> (i32, i32) {
    %c0_i32 = arith.constant 0 : i32
    %c0_i32_0 = arith.constant 0 : i32
    %c0_i32_1 = arith.constant 0 : i32
    return %c0_i32, %c0_i32_0 : i32, i32
  }
  func.func @transform_3(%arg0: i32, %arg1: i32) -> (i32, i32) {
    %c0_i32 = arith.constant 0 : i32
    %c0_i32_0 = arith.constant 0 : i32
    return %arg0, %c0_i32 : i32, i32
  }
}

</mosaic_0001>

<llo_original>
// kernel: tpu_custom_call.1
$region0: #{tpu_custom_call.1}
  #allocation0 [shape = 'u32[]', space=smem, size = 0x4, offset = 0x4, fixed_abs, tag = 'smem constant byte address 0x4 - core index']
  #allocation1 [shape = 'u32[144,128]{1,0:T(1,128)}', space=vmem, size = 0x12000, scoped, tag = 'internal scratch']
  #allocation2 [shape = 'f32[56,128]{1,0:T(8,128)}', space=vmem, size = 0x7000, scoped, tag = 'scratch operand']
  %s0 = inlined_call_operand.hbm [shape: f32[54,54], index: 0, kind: input, shape index: {}]
  %s1 = inlined_call_operand.hbm [shape: f32[54,128], index: 1, kind: input, shape index: {}]
  %s2 = inlined_call_operand.vmem [shape: f32[1,128], index: 2, kind: input, shape index: {}]
  %s3 = inlined_call_operand.hbm [shape: f32[54,128], index: 3, kind: output, shape index: {}]
  %s4 = sld [smem:[#allocation0]]
  $region38: #{tpu_custom_call.1} parent=0
    _
  %s6 = ssub.s32 1, %s4
  %s7 = scalar_select 0, %s6, %s4
  $region1: #{tpu_custom_call.1} parent=0
    #allocation3 [shape = 'u8[28672]{0}', space=vmem, size = 0x7000, scoped, tag = 'input window, operand 0, single buffered']
    #allocation4 [shape = 's32[1]{0}', space=sflag, size = 0x4, scoped, tag = 'scoped memory for tpu_custom_call.1']
    #allocation5 [shape = 's32[1]{0}', space=sflag, size = 0x4, scoped, tag = 'scoped memory for tpu_custom_call.1']
    #allocation6 [shape = 'u8[28672]{0}', space=vmem, size = 0x7000, scoped, tag = 'input window, operand 1, single buffered']
    #allocation7 [shape = 's32[1]{0}', space=sflag, size = 0x4, scoped, tag = 'scoped memory for tpu_custom_call.1']
    #allocation8 [shape = 'u8[28672]{0}', space=vmem, size = 0x7000, scoped, tag = 'output window, operand 0, single buffered']
    %8 = vsyncpa [#allocation4], 0
    %9 = vsyncpa [#allocation7], 0
    %10 = vsyncpa [#allocation5], 0
    // Predicated region
    $region2: #{tpu_custom_call.1} parent=1 // pred_check
      _
    $region3: #{tpu_custom_call.1} parent=1 // pred_check_branch
      %12 = sbr.rel (0) target = $region5
    $region4: #{tpu_custom_call.1} parent=1 // pred_region
      %s14 = ssub.s32 896, 896
      %15 = vsyncadd [#allocation4], %s14
      %s16 = sshll.u32 [#allocation3], 4
      %s17 = int_to_ptr.vmem [resolvable:$true] %s16
      %22 = dma.hbm_to_vmem [thread:$0]  %s0, 896, %s17, [#allocation4], 128, 128, 8
    $region5: #{tpu_custom_call.1} parent=1 // pred_fallthru
      _
    // Predicated region
    $region6: #{tpu_custom_call.1} parent=1 // pred_check
      _
    $region7: #{tpu_custom_call.1} parent=1 // pred_check_branch
      %24 = sbr.rel (0) target = $region9
    $region8: #{tpu_custom_call.1} parent=1 // pred_region
      %s26 = ssub.s32 896, 896
      %27 = vsyncadd [#allocation7], %s26
      %s28 = sshll.u32 [#allocation6], 4
      %s29 = int_to_ptr.vmem [resolvable:$true] %s28
      %34 = dma.hbm_to_vmem [thread:$0]  %s1, 896, %s29, [#allocation7], 128, 128, 8
    $region9: #{tpu_custom_call.1} parent=1 // pred_fallthru
      _
    // Predicated region
    $region10: #{tpu_custom_call.1} parent=1 // pred_check
      _
    $region11: #{tpu_custom_call.1} parent=1 // pred_check_branch
      %36 = sbr.rel (0) target = $region13
    $region12: #{tpu_custom_call.1} parent=1 // pred_region
      _
    $region13: #{tpu_custom_call.1} parent=1 // pred_fallthru
      _
    // Predicated region
    $region14: #{tpu_custom_call.1} parent=1 // pred_check
      _
    $region15: #{tpu_custom_call.1} parent=1 // pred_check_branch
      %38 = sbr.rel (0) target = $region17
    $region16: #{tpu_custom_call.1} parent=1 // pred_region
      %39 = dma.done [#allocation4], 896
    $region17: #{tpu_custom_call.1} parent=1 // pred_fallthru
      _
    // Predicated region
    $region18: #{tpu_custom_call.1} parent=1 // pred_check
      _
    $region19: #{tpu_custom_call.1} parent=1 // pred_check_branch
      %41 = sbr.rel (0) target = $region21
    $region20: #{tpu_custom_call.1} parent=1 // pred_region
      %42 = dma.done [#allocation7], 896
    $region21: #{tpu_custom_call.1} parent=1 // pred_fallthru
      _
    %p43 = scmp.eq.s32.totalorder 0, 0
    // Predicated region
    $region22: #{tpu_custom_call.1} parent=1 // pred_check
      %p44 = pneg %p43
    $region23: #{tpu_custom_call.1} parent=1 // pred_check_branch
      %46 = sbr.rel (%p44) target = $region25
    $region24: #{tpu_custom_call.1} parent=1 // pred_region
      %47 = vst [vmem:[#allocation2] sm:$0xff] 0.0
      %48 = vst [vmem:[#allocation2 + $0x8] sm:$0xff] 0.0
      %49 = vst [vmem:[#allocation2 + $0x10] sm:$0xff] 0.0
      %50 = vst [vmem:[#allocation2 + $0x18] sm:$0xff] 0.0
      %51 = vst [vmem:[#allocation2 + $0x20] sm:$0xff] 0.0
      %52 = vst [vmem:[#allocation2 + $0x28] sm:$0xff] 0.0
      %53 = vst [vmem:[#allocation2 + $0x30] sm:$0xff] 0.0
    $region25: #{tpu_custom_call.1} parent=1 // pred_fallthru
      _
    %v54 = vld [vmem:[#allocation2] sm:$0xff]
    %v55 = vld [vmem:[#allocation2 + $0x8] sm:$0xff]
    %v56 = vld [vmem:[#allocation2 + $0x10] sm:$0xff]
    %v57 = vld [vmem:[#allocation2 + $0x18] sm:$0xff]
    %v58 = vld [vmem:[#allocation2 + $0x20] sm:$0xff]
    %v59 = vld [vmem:[#allocation2 + $0x28] sm:$0xff]
    %v60 = vld [vmem:[#allocation2 + $0x30] sm:$0xff]
    %v61 = vld [vmem:[#allocation3] sm:$0xff]
    %v62 = vld [vmem:[#allocation3 + $0x8] sm:$0xff]
    %v63 = vld [vmem:[#allocation3 + $0x10] sm:$0xff]
    %v64 = vld [vmem:[#allocation3 + $0x18] sm:$0xff]
    %v65 = vld [vmem:[#allocation3 + $0x20] sm:$0xff]
    %v66 = vld [vmem:[#allocation3 + $0x28] sm:$0xff]
    %v67 = vld [vmem:[#allocation3 + $0x30] sm:$0xff]
    %v68 = vld [vmem:[#allocation6] sm:$0xff]
    %v69 = vld [vmem:[#allocation6 + $0x8] sm:$0xff]
    %v70 = vld [vmem:[#allocation6 + $0x10] sm:$0xff]
    %v71 = vld [vmem:[#allocation6 + $0x18] sm:$0xff]
    %v72 = vld [vmem:[#allocation6 + $0x20] sm:$0xff]
    %v73 = vld [vmem:[#allocation6 + $0x28] sm:$0xff]
    %v74 = vld [vmem:[#allocation6 + $0x30] sm:$0x3f]
    %vm75 = vcmask 441344
    %v77 = vsel %vm75, %v61, 0
    %v80 = vsel %vm75, %v62, 0
    %v83 = vsel %vm75, %v63, 0
    %v86 = vsel %vm75, %v64, 0
    %v89 = vsel %vm75, %v65, 0
    %v92 = vsel %vm75, %v66, 0
    %v95 = vsel %vm75, %v67, 0
    %vm97 = vcmask 1045504
    %v99 = vsel %vm97, %v74, 0
    %101 = vmatprep.subr.mxu0 0.0
    %102 = vmatpush1.msra.mxu0 %v68
    %103 = vmatprep.subr.mxu0 0.0
    %104 = vmatpush1.msra.mxu0 %v69
    %105 = vmatprep.subr.mxu0 0.0
    %106 = vmatpush1.msra.mxu0 %v70
    %107 = vmatprep.subr.mxu0 0.0
    %108 = vmatpush1.msra.mxu0 %v71
    %109 = vmatprep.subr.mxu0 0.0
    %110 = vmatpush1.msra.mxu0 %v72
    %111 = vmatprep.subr.mxu0 0.0
    %112 = vmatpush1.msra.mxu0 %v73
    %113 = vmatprep.subr.mxu0 0.0
    %114 = vmatpush1.msra.mxu0 %v99
    %115 = vmatprep.subr.mxu0 0.0
    %116 = vmatpush1.msra.mxu0 0.0
    %117 = vmatprep.subr.mxu0 0.0
    %118 = vmatpush1.msra.mxu0 0.0
    %119 = vmatprep.subr.mxu0 0.0
    %120 = vmatpush1.msra.mxu0 0.0
    %121 = vmatprep.subr.mxu0 0.0
    %122 = vmatpush1.msra.mxu0 0.0
    %123 = vmatprep.subr.mxu0 0.0
    %124 = vmatpush1.msra.mxu0 0.0
    %125 = vmatprep.subr.mxu0 0.0
    %126 = vmatpush1.msra.mxu0 0.0
    %127 = vmatprep.subr.mxu0 0.0
    %128 = vmatpush1.msra.mxu0 0.0
    %129 = vmatprep.subr.mxu0 0.0
    %130 = vmatpush1.msra.mxu0 0.0
    %131 = vmatprep.subr.mxu0 0.0
    %132 = vmatpush1.msra.mxu0 0.0
    %133 = vmatprep.subr.mxu0 0.0
    %134 = vmatpush1.msra.mxu0 0.0
    %135 = vmatprep.subr.mxu0 0.0
    %136 = vmatpush1.msra.mxu0 0.0
    %137 = vmatprep.subr.mxu0 0.0
    %138 = vmatpush1.msra.mxu0 0.0
    %139 = vmatprep.subr.mxu0 0.0
    %140 = vmatpush1.msra.mxu0 0.0
    %141 = vmatprep.subr.mxu0 0.0
    %142 = vmatpush1.msra.mxu0 0.0
    %143 = vmatprep.subr.mxu0 0.0
    %144 = vmatpush1.msra.mxu0 0.0
    %145 = vmatprep.subr.mxu0 0.0
    %146 = vmatpush1.msra.mxu0 0.0
    %147 = vmatprep.subr.mxu0 0.0
    %148 = vmatpush1.msra.mxu0 0.0
    %149 = vmatprep.subr.mxu0 0.0
    %150 = vmatpush1.msra.mxu0 0.0
    %151 = vmatprep.subr.mxu0 0.0
    %152 = vmatpush1.msra.mxu0 0.0
    %153 = vmatprep.subr.mxu0 0.0
    %154 = vmatpush1.msra.mxu0 0.0
    %155 = vmatprep.subr.mxu0 0.0
    %156 = vmatpush1.msra.mxu0 0.0
    %157 = vmatprep.subr.mxu0 0.0
    %158 = vmatpush1.msra.mxu0 0.0
    %159 = vmatprep.subr.mxu0 0.0
    %160 = vmatpush1.msra.mxu0 0.0
    %161 = vmatprep.subr.mxu0 0.0
    %162 = vmatpush1.msra.mxu0 0.0
    %163 = vmatprep.subr.mxu0 0.0
    %164 = vmatpush1.msra.mxu0 0.0
    %165 = vmatprep.mubr.f32.mxu0 0.0
    %166 = vmatmul.mubr.f32.gmra.mrb[0].mxu0 %v77
    %v167 = vpop.f32.mrb[0].mxu0
    %v168 = vadd.f32 0.0, %v167
    %v169 = vpop.f32.mrb[0].mxu0
    %170 = vmatprep.mubr.f32.mxu0 0.0
    %171 = vmatmul.mubr.f32.gmra.mrb[0].mxu0 %v80
    %v172 = vpop.f32.mrb[0].mxu0
    %v173 = vadd.f32 0.0, %v172
    %v174 = vpop.f32.mrb[0].mxu0
    %175 = vmatprep.mubr.f32.mxu0 0.0
    %176 = vmatmul.mubr.f32.gmra.mrb[0].mxu0 %v83
    %v177 = vpop.f32.mrb[0].mxu0
    %v178 = vadd.f32 0.0, %v177
    %v179 = vpop.f32.mrb[0].mxu0
    %180 = vmatprep.mubr.f32.mxu0 0.0
    %181 = vmatmul.mubr.f32.gmra.mrb[0].mxu0 %v86
    %v182 = vpop.f32.mrb[0].mxu0
    %v183 = vadd.f32 0.0, %v182
    %v184 = vpop.f32.mrb[0].mxu0
    %185 = vmatprep.mubr.f32.mxu0 0.0
    %186 = vmatmul.mubr.f32.gmra.mrb[0].mxu0 %v89
    %v187 = vpop.f32.mrb[0].mxu0
    %v188 = vadd.f32 0.0, %v187
    %v189 = vpop.f32.mrb[0].mxu0
    %190 = vmatprep.mubr.f32.mxu0 0.0
    %191 = vmatmul.mubr.f32.gmra.mrb[0].mxu0 %v92
    %v192 = vpop.f32.mrb[0].mxu0
    %v193 = vadd.f32 0.0, %v192
    %v194 = vpop.f32.mrb[0].mxu0
    %195 = vmatprep.mubr.f32.mxu0 0.0
    %196 = vmatmul.mubr.f32.gmra.mrb[0].mxu0 %v95
    %v197 = vpop.f32.mrb[0].mxu0
    %v198 = vadd.f32 0.0, %v197
    %v199 = vpop.f32.mrb[0].mxu0
    %200 = vdwg.mxu0
    %v201 = vadd.f32 %v54, %v168
    %v202 = vadd.f32 %v55, %v173
    %v203 = vadd.f32 %v56, %v178
    %v204 = vadd.f32 %v57, %v183
    %v205 = vadd.f32 %v58, %v188
    %v206 = vadd.f32 %v59, %v193
    %v207 = vadd.f32 %v60, %v198
    %208 = vst [vmem:[#allocation2] sm:$0xff] %v201
    %209 = vst [vmem:[#allocation2 + $0x8] sm:$0xff] %v202
    %210 = vst [vmem:[#allocation2 + $0x10] sm:$0xff] %v203
    %211 = vst [vmem:[#allocation2 + $0x18] sm:$0xff] %v204
    %212 = vst [vmem:[#allocation2 + $0x20] sm:$0xff] %v205
    %213 = vst [vmem:[#allocation2 + $0x28] sm:$0xff] %v206
    %214 = vst [vmem:[#allocation2 + $0x30] sm:$0xff] %v207
    // Predicated region
    $region26: #{tpu_custom_call.1} parent=1 // pred_check
      %p215 = pneg %p43
    $region27: #{tpu_custom_call.1} parent=1 // pred_check_branch
      %217 = sbr.rel (%p215) target = $region29
    $region28: #{tpu_custom_call.1} parent=1 // pred_region
      %v218 = vld [vmem:[#allocation2] sm:$0xff]
      %v219 = vld [vmem:[#allocation2 + $0x8] sm:$0xff]
      %v220 = vld [vmem:[#allocation2 + $0x10] sm:$0xff]
      %v221 = vld [vmem:[#allocation2 + $0x18] sm:$0xff]
      %v222 = vld [vmem:[#allocation2 + $0x20] sm:$0xff]
      %v223 = vld [vmem:[#allocation2 + $0x28] sm:$0xff]
      %v224 = vld [vmem:[#allocation2 + $0x30] sm:$0xff]
      %v225 = vld [vmem:[%s2] sm:$0x1]
      %v227 = vlaneseq
      %v228 = vshrl.u32 %v227, 7
      %v229 = vsub.s32 0, %v228
      %v230 = vrot.slane %v225, %v229
      %v232 = vadd.f32 %v218, %v230
      %v233 = vadd.f32 %v219, %v230
      %v234 = vadd.f32 %v220, %v230
      %v235 = vadd.f32 %v221, %v230
      %v236 = vadd.f32 %v222, %v230
      %v237 = vadd.f32 %v223, %v230
      %v238 = vadd.f32 %v224, %v230
      %vm239 = vcmp.ge.f32.partialorder %v232, 0.0
      %vm240 = vcmp.ge.f32.partialorder %v233, 0.0
      %vm241 = vcmp.ge.f32.partialorder %v234, 0.0
      %vm242 = vcmp.ge.f32.partialorder %v235, 0.0
      %vm243 = vcmp.ge.f32.partialorder %v236, 0.0
      %vm244 = vcmp.ge.f32.partialorder %v237, 0.0
      %vm245 = vcmp.ge.f32.partialorder %v238, 0.0
      %v246 = vmul.f32 %v232, 0.01
      %v247 = vmul.f32 %v233, 0.01
      %v248 = vmul.f32 %v234, 0.01
      %v249 = vmul.f32 %v235, 0.01
      %v250 = vmul.f32 %v236, 0.01
      %v251 = vmul.f32 %v237, 0.01
      %v252 = vmul.f32 %v238, 0.01
      %v253 = vsel %vm239, %v232, %v246
      %v254 = vsel %vm240, %v233, %v247
      %v255 = vsel %vm241, %v234, %v248
      %v256 = vsel %vm242, %v235, %v249
      %v257 = vsel %vm243, %v236, %v250
      %v258 = vsel %vm244, %v237, %v251
      %v259 = vsel %vm245, %v238, %v252
      %260 = vst [vmem:[#allocation8] sm:$0xff] %v253
      %261 = vst [vmem:[#allocation8 + $0x8] sm:$0xff] %v254
      %262 = vst [vmem:[#allocation8 + $0x10] sm:$0xff] %v255
      %263 = vst [vmem:[#allocation8 + $0x18] sm:$0xff] %v256
      %264 = vst [vmem:[#allocation8 + $0x20] sm:$0xff] %v257
      %265 = vst [vmem:[#allocation8 + $0x28] sm:$0xff] %v258
      %266 = vst [vmem:[#allocation8 + $0x30] sm:$0xff] %v259
    $region29: #{tpu_custom_call.1} parent=1 // pred_fallthru
      _
    // Predicated region
    $region30: #{tpu_custom_call.1} parent=1 // pred_check
      _
    $region31: #{tpu_custom_call.1} parent=1 // pred_check_branch
      %268 = sbr.rel (0) target = $region33
    $region32: #{tpu_custom_call.1} parent=1 // pred_region
      %s270 = ssub.s32 896, 896
      %271 = vsyncadd [#allocation5], %s270
      %s272 = sshll.u32 [#allocation8], 4
      %s273 = int_to_ptr.vmem [resolvable:$true] %s272
      %278 = dma.vmem_to_hbm [thread:$0]  %s273, 896, %s3, [#allocation5], 128, 128, 8
    $region33: #{tpu_custom_call.1} parent=1 // pred_fallthru
      _
    // Predicated region
    $region34: #{tpu_custom_call.1} parent=1 // pred_check
      _
    $region35: #{tpu_custom_call.1} parent=1 // pred_check_branch
      %280 = sbr.rel (0) target = $region37
    $region36: #{tpu_custom_call.1} parent=1 // pred_region
      %281 = dma.done [#allocation5], 896
    $region37: #{tpu_custom_call.1} parent=1 // pred_fallthru
      _
    %282 = vsyncpa [#allocation4], 1
    %283 = vsyncpa [#allocation7], 1
    %284 = vsyncpa [#allocation5], 1

</llo_original>
